<compile_context>
chip_gen: v7x
topology: tpu7x:2x2x1
jax: 0.10.0
libtpu: 0.0.40
codegen_flags: <defaults>
</compile_context>

<pallas_src>
import functools
from typing import NamedTuple

import numpy as np
import jax
import jax.numpy as jnp
from jax.experimental import pallas as pl
from jax.experimental.pallas import tpu as pltpu


def _round_up(x, m):
    return (x + m - 1) // m * m


def _vmem_capacity_bytes():
    """Physical VMEM per TensorCore; conservative fallback if the query is unavailable."""
    try:
        info = pltpu.get_tpu_info()
        cap = getattr(info, "vmem_capacity_bytes", None)
        if cap:
            return int(cap)
    except Exception:
        pass
    return 64 * 1024 * 1024  # v7x per-TC (most restrictive modern generation)


class BasisLinearConfig(NamedTuple):
    insize: int
    outsize: int
    k_pad: int
    o_pad: int
    block_o: int
    block_b: int
    vmem_limit_bytes: int


def prepare_basis_linear(W, b, insize, *, max_block_b=512, max_block_o=1024,
                         param_dtype=None):
    """One-time parameter re-layout + tile selection (hoisted out of the per-call path).

    W: (outsize, insize + insize*(insize+1)//2) — slim.Linear weight over Poly2 features.
    b: (outsize,) bias.
    Returns (params, cfg) for basis_linear_pallas.
    """
    O, inlin = W.shape
    I = int(insize)
    n_tri = I * (I + 1) // 2
    assert inlin == I + n_tri, "weight width does not match Poly2(insize) expansion"

    if param_dtype is not None:
        W = W.astype(param_dtype)
        b = b.astype(param_dtype)
    dtype = W.dtype
    itemsize = jnp.dtype(dtype).itemsize

    k_pad = _round_up(n_tri, 128)          # packed-triu K, padded to lane multiple

    # ---- generation-aware VMEM budget & tile selection ----
    vmem_cap = _vmem_capacity_bytes()
    budget = int(vmem_cap * 0.45)          # keep working set under ~half of VMEM (v7x = 64 MiB)

    pack = 8 * (4 // itemsize)             # sublane pack: 8 f32 / 16 bf16 / 32 int8
    tb = max(pack, _round_up(int(max_block_b), pack))
    to = max(128, min(_round_up(int(max_block_o), 128), _round_up(O, 128)))

    def working_set(tb_, to_):
        return (2 * k_pad * to_ * itemsize       # W_quad tile (double-buffered)
                + 2 * I * to_ * itemsize         # W_lin tile
                + 2 * 8 * to_ * itemsize         # bias tile (sublane-padded)
                + 2 * 2 * I * k_pad * itemsize   # E_rep + E_til (double-buffered)
                + 2 * tb_ * I * itemsize         # x tile
                + 2 * tb_ * to_ * itemsize       # output tile
                + 3 * tb_ * k_pad * itemsize     # x_rep / x_til / xx temporaries
                + tb_ * to_ * 4)                 # f32 accumulator

    while working_set(tb, to) > budget and to > 128:
        to = max(128, (to // 2) // 128 * 128)
    while working_set(tb, to) > budget and tb > pack:
        tb = max(pack, (tb // 2) // pack * pack)

    o_pad = _round_up(O, to)
    vmem_limit = int(min(vmem_cap, max(32 * 1024 * 1024, 2 * working_set(tb, to))))

    # ---- parameter re-layout (runs once, on device) ----
    # Row t of w_quad is the t-th (i, j) pair of np.triu_indices(I) (row-major), exactly
    # matching Poly2's feature ordering, so W[:, I:].T is used directly (zero-pad only).
    w_quad = jnp.pad(W[:, I:].T, ((0, k_pad - n_tri), (0, o_pad - O)))   # (K_pad, O_pad)
    w_lin = jnp.pad(W[:, :I].T, ((0, 0), (0, o_pad - O)))                # (I, O_pad)
    bias = jnp.pad(jnp.asarray(b).reshape(1, O), ((0, 0), (0, o_pad - O)))  # (1, O_pad)

    # Constant 0/1 selection matrices for the packed expansion:
    #   (x @ E_rep)[b, t] = x[b, rows[t]],   (x @ E_til)[b, t] = x[b, cols[t]]
    rows, cols = np.triu_indices(I)
    t_idx = np.arange(n_tri)
    e_rep = np.zeros((I, k_pad), dtype=np.float32)
    e_rep[rows, t_idx] = 1.0
    e_til = np.zeros((I, k_pad), dtype=np.float32)
    e_til[cols, t_idx] = 1.0
    e_rep = jnp.asarray(e_rep, dtype=dtype)
    e_til = jnp.asarray(e_til, dtype=dtype)

    params = (w_quad, w_lin, bias, e_rep, e_til)
    cfg = BasisLinearConfig(insize=I, outsize=int(O), k_pad=int(k_pad), o_pad=int(o_pad),
                            block_o=int(to), block_b=int(tb),
                            vmem_limit_bytes=int(vmem_limit))
    return params, cfg


def _basis_linear_kernel(x_ref, erep_ref, etil_ref, wq_ref, wl_ref, b_ref, o_ref):
    # x_ref:    (TB, I)
    # erep_ref: (I, K_pad)   erep[rows[t], t] = 1
    # etil_ref: (I, K_pad)   etil[cols[t], t] = 1
    # wq_ref:   (K_pad, TO)  triu-packed quadratic weights (lane-dense)
    # wl_ref:   (I, TO)      linear-term weights
    # b_ref:    (1, TO)      bias
    # o_ref:    (TB, TO)
    x = x_ref[...]

    # Packed quadratic features xx[b, t] = x[b, rows[t]] * x[b, cols[t]].
    # Two cheap K=I selection matmuls + a VPU multiply (no in-kernel reshape/gather).
    x_rep = jnp.dot(x, erep_ref[...], preferred_element_type=x.dtype)
    x_til = jnp.dot(x, etil_ref[...], preferred_element_type=x.dtype)
    xx = x_rep * x_til                                     # (TB, K_pad)

    # Single big-K MXU contraction (K = K_pad) + small linear term (K = I) + bias.
    acc = jnp.dot(xx, wq_ref[...], preferred_element_type=jnp.float32)
    acc = acc + jnp.dot(x, wl_ref[...], preferred_element_type=jnp.float32)
    acc = acc + b_ref[...].astype(jnp.float32)
    o_ref[...] = acc.astype(o_ref.dtype)


@functools.partial(jax.jit, static_argnames=("cfg",))
def basis_linear_pallas(x, params, cfg):
    """y = Linear(Poly2(x)) using pre-laid-out params from prepare_basis_linear."""
    w_quad, w_lin, bias, e_rep, e_til = params
    B, I = x.shape
    assert I == cfg.insize

    compute_dtype = w_quad.dtype
    x = x.astype(compute_dtype)

    itemsize = jnp.dtype(compute_dtype).itemsize
    pack = 8 * (4 // itemsize)
    tb = min(cfg.block_b, _round_up(B, pack))
    b_pad = _round_up(B, tb)
    to = cfg.block_o
    o_pad = cfg.o_pad
    k_pad = cfg.k_pad

    x_p = jnp.pad(x, ((0, b_pad - B), (0, 0))) if b_pad != B else x

    o_blocks = o_pad // to
    b_blocks = b_pad // tb
    # Weight-stationary ordering: o outer ("parallel"), batch inner ("arbitrary") so the
    # resident weight tiles are revisited instead of re-DMA'd.  When o has a single block,
    # promote the batch axis to "parallel" so v7x can still shard across both TensorCores.
    grid = (o_blocks, b_blocks)
    sems = ("parallel", "parallel" if o_blocks == 1 else "arbitrary")

    out = pl.pallas_call(
        _basis_linear_kernel,
        out_shape=jax.ShapeDtypeStruct((b_pad, o_pad), compute_dtype),
        grid_spec=pltpu.PrefetchScalarGridSpec(
            num_scalar_prefetch=0,
            grid=grid,
            in_specs=[
                pl.BlockSpec((tb, I), lambda oi, bi: (bi, 0)),       # x tile (changes inner)
                pl.BlockSpec((I, k_pad), lambda oi, bi: (0, 0)),     # E_rep (resident)
                pl.BlockSpec((I, k_pad), lambda oi, bi: (0, 0)),     # E_til (resident)
                pl.BlockSpec((k_pad, to), lambda oi, bi: (0, oi)),   # W_quad (stationary inner)
                pl.BlockSpec((I, to), lambda oi, bi: (0, oi)),       # W_lin
                pl.BlockSpec((1, to), lambda oi, bi: (0, oi)),       # bias
            ],
            out_specs=pl.BlockSpec((tb, to), lambda oi, bi: (bi, oi)),
        ),
        compiler_params=pltpu.CompilerParams(
            dimension_semantics=sems,
            vmem_limit_bytes=cfg.vmem_limit_bytes,
        ),
    )(x_p, e_rep, e_til, w_quad, w_lin, bias)

    return out[:B, :cfg.outsize]


def basis_linear_ref(x, W, b):
    # pure-JAX reference matching BasisLinear.forward (Poly2 expansion + Linear)
    I = x.shape[-1]
    rows, cols = np.triu_indices(I)
    expansion = (x[:, :, None] * x[:, None, :])[:, rows, cols]
    z = jnp.concatenate([x, expansion], axis=-1)
    return z @ W.T + b[None, :]


if __name__ == "__main__":
    insize, outsize, batch = 32, 16, 8
    inlin = insize + insize * (insize + 1) // 2          # Poly2 output width = 560

    key = jax.random.PRNGKey(0)
    kx, kw, kb = jax.random.split(key, 3)

    # Deterministic params (shapes follow Linear(inlin, outsize) inside BasisLinear).
    bound = 1.0 / float(np.sqrt(inlin))
    W = jax.random.uniform(kw, (outsize, inlin), minval=-bound, maxval=bound,
                           dtype=jnp.float32)
    b = jax.random.uniform(kb, (outsize,), minval=-bound, maxval=bound,
                           dtype=jnp.float32)
    x = jax.random.normal(kx, (batch, insize), dtype=jnp.float32)

    # One-time parameter re-layout (hoisted out of the forward path).
    params, cfg = prepare_basis_linear(W, b, insize)

    y = basis_linear_pallas(x, params, cfg=cfg)
    y = jax.block_until_ready(y)

    y_ref = basis_linear_ref(x, W, b)
    assert y.shape == (batch, outsize)
    assert jnp.allclose(y, y_ref, atol=1e-3, rtol=1e-3), "mismatch vs reference"

    print("KERNEL_OK")
</pallas_src>

<mosaic_0001>
module attributes {stable_mosaic.version = 11 : i64} {
  func.func @_basis_linear_kernel(%arg0: i32, %arg1: i32, %arg2: memref<8x32xf32, #tpu.memory_space<vmem>>, %arg3: memref<32x640xf32, #tpu.memory_space<vmem>>, %arg4: memref<32x640xf32, #tpu.memory_space<vmem>>, %arg5: memref<640x128xf32, #tpu.memory_space<vmem>>, %arg6: memref<32x128xf32, #tpu.memory_space<vmem>>, %arg7: memref<1x128xf32, #tpu.memory_space<vmem>>, %arg8: memref<8x128xf32, #tpu.memory_space<vmem>>) attributes {dimension_semantics = [#tpu.dimension_semantics<parallel>, #tpu.dimension_semantics<parallel>], iteration_bounds = array<i64: 1, 1>, scalar_prefetch = 0 : i64, scratch_operands = 0 : i64, tpu.core_type = #tpu.core_type<tc>, window_params = [{transform_indices = @transform_0, window_bounds = array<i64: 8, 32>}, {pipeline_mode = #tpu.pipeline_mode<synchronous>, transform_indices = @transform_1, window_bounds = array<i64: 32, 640>}, {pipeline_mode = #tpu.pipeline_mode<synchronous>, transform_indices = @transform_2, window_bounds = array<i64: 32, 640>}, {transform_indices = @transform_3, window_bounds = array<i64: 640, 128>}, {transform_indices = @transform_4, window_bounds = array<i64: 32, 128>}, {transform_indices = @transform_5, window_bounds = array<i64: 1, 128>}, {transform_indices = @transform_6, window_bounds = array<i64: 8, 128>}]} {
    %c0 = arith.constant 0 : index
    %c0_0 = arith.constant 0 : index
    %0 = vector.load %arg2[%c0, %c0_0] : memref<8x32xf32, #tpu.memory_space<vmem>>, vector<8x32xf32>
    %c0_1 = arith.constant 0 : index
    %c0_2 = arith.constant 0 : index
    %1 = vector.load %arg3[%c0_1, %c0_2] : memref<32x640xf32, #tpu.memory_space<vmem>>, vector<32x640xf32>
    %cst = arith.constant dense<0.000000e+00> : vector<8x640xf32>
    %2 = tpu.matmul %0, %1, %cst {dimension_numbers = #tpu.dot_dimension_numbers<[1], [0], [0], [1], [0, 0, 1, 1], [], []>} : vector<8x32xf32>, vector<32x640xf32>, vector<8x640xf32> -> vector<8x640xf32>
    %c0_3 = arith.constant 0 : index
    %c0_4 = arith.constant 0 : index
    %3 = vector.load %arg4[%c0_3, %c0_4] : memref<32x640xf32, #tpu.memory_space<vmem>>, vector<32x640xf32>
    %cst_5 = arith.constant dense<0.000000e+00> : vector<8x640xf32>
    %4 = tpu.matmul %0, %3, %cst_5 {dimension_numbers = #tpu.dot_dimension_numbers<[1], [0], [0], [1], [0, 0, 1, 1], [], []>} : vector<8x32xf32>, vector<32x640xf32>, vector<8x640xf32> -> vector<8x640xf32>
    %5 = arith.mulf %2, %4 : vector<8x640xf32>
    %c0_6 = arith.constant 0 : index
    %c0_7 = arith.constant 0 : index
    %6 = vector.load %arg5[%c0_6, %c0_7] : memref<640x128xf32, #tpu.memory_space<vmem>>, vector<640x128xf32>
    %cst_8 = arith.constant dense<0.000000e+00> : vector<8x128xf32>
    %7 = tpu.matmul %5, %6, %cst_8 {dimension_numbers = #tpu.dot_dimension_numbers<[1], [0], [0], [1], [0, 0, 1, 1], [], []>} : vector<8x640xf32>, vector<640x128xf32>, vector<8x128xf32> -> vector<8x128xf32>
    %c0_9 = arith.constant 0 : index
    %c0_10 = arith.constant 0 : index
    %8 = vector.load %arg6[%c0_9, %c0_10] : memref<32x128xf32, #tpu.memory_space<vmem>>, vector<32x128xf32>
    %cst_11 = arith.constant dense<0.000000e+00> : vector<8x128xf32>
    %9 = tpu.matmul %0, %8, %cst_11 {dimension_numbers = #tpu.dot_dimension_numbers<[1], [0], [0], [1], [0, 0, 1, 1], [], []>} : vector<8x32xf32>, vector<32x128xf32>, vector<8x128xf32> -> vector<8x128xf32>
    %10 = arith.addf %7, %9 : vector<8x128xf32>
    %c0_12 = arith.constant 0 : index
    %c0_13 = arith.constant 0 : index
    %11 = vector.load %arg7[%c0_12, %c0_13] : memref<1x128xf32, #tpu.memory_space<vmem>>, vector<1x128xf32>
    %12 = vector.broadcast %11 : vector<1x128xf32> to vector<8x128xf32>
    %13 = arith.addf %10, %12 : vector<8x128xf32>
    %c0_14 = arith.constant 0 : index
    %c0_15 = arith.constant 0 : index
    %14 = vector.load %arg8[%c0_14, %c0_15] : memref<8x128xf32, #tpu.memory_space<vmem>>, vector<8x128xf32>
    tpu.vector_store %arg8[%c0_14, %c0_15], %13 {strides = array<i32>} : memref<8x128xf32, #tpu.memory_space<vmem>>, vector<8x128xf32>,
    return
  }
  func.func @transform_0(%arg0: i32, %arg1: i32) -> (i32, i32) {
    %c0_i32 = arith.constant 0 : i32
    %c0_i32_0 = arith.constant 0 : i32
    return %arg1, %c0_i32 : i32, i32
  }
  func.func @transform_1(%arg0: i32, %arg1: i32) -> (i32, i32) {
    %c0_i32 = arith.constant 0 : i32
    %c0_i32_0 = arith.constant 0 : i32
    %c0_i32_1 = arith.constant 0 : i32
    return %c0_i32, %c0_i32_0 : i32, i32
  }
  func.func @transform_2(%arg0: i32, %arg1: i32) -> (i32, i32) {
    %c0_i32 = arith.constant 0 : i32
    %c0_i32_0 = arith.constant 0 : i32
    %c0_i32_1 = arith.constant 0 : i32
    return %c0_i32, %c0_i32_0 : i32, i32
  }
  func.func @transform_3(%arg0: i32, %arg1: i32) -> (i32, i32) {
    %c0_i32 = arith.constant 0 : i32
    %c0_i32_0 = arith.constant 0 : i32
    return %c0_i32, %arg0 : i32, i32
  }
  func.func @transform_4(%arg0: i32, %arg1: i32) -> (i32, i32) {
    %c0_i32 = arith.constant 0 : i32
    %c0_i32_0 = arith.constant 0 : i32
    return %c0_i32, %arg0 : i32, i32
  }
  func.func @transform_5(%arg0: i32, %arg1: i32) -> (i32, i32) {
    %c0_i32 = arith.constant 0 : i32
    %c0_i32_0 = arith.constant 0 : i32
    return %c0_i32, %arg0 : i32, i32
  }
  func.func @transform_6(%arg0: i32, %arg1: i32) -> (i32, i32) {
    %c0_i32 = arith.constant 0 : i32
    return %arg1, %arg0 : i32, i32
  }
}

</mosaic_0001>

<llo_original>
// kernel: basis_linear_pallas.1
$region0: #{basis_linear_pallas.1}
  #allocation0 [shape = 'u32[]', space=smem, size = 0x4, offset = 0x4, fixed_abs, tag = 'smem constant byte address 0x4 - core index']
  #allocation1 [shape = 'u32[144,128]{1,0:T(1,128)}', space=vmem, size = 0x12000, scoped, tag = 'internal scratch']
  %s0 = inlined_call_operand.hbm [shape: f32[8,32], index: 0, kind: input, shape index: {}]
  %s1 = inlined_call_operand.hbm [shape: f32[32,640], index: 1, kind: input, shape index: {}]
  %s2 = inlined_call_operand.hbm [shape: f32[32,640], index: 2, kind: input, shape index: {}]
  %s3 = inlined_call_operand.hbm [shape: f32[640,128], index: 3, kind: input, shape index: {}]
  %s4 = inlined_call_operand.hbm [shape: f32[32,128], index: 4, kind: input, shape index: {}]
  %s5 = inlined_call_operand.vmem [shape: f32[1,128], index: 5, kind: input, shape index: {}]
  %s6 = inlined_call_operand.hbm [shape: f32[8,128], index: 6, kind: output, shape index: {}]
  %s7 = sld [smem:[#allocation0]]
  $region54: #{basis_linear_pallas.1} parent=0
    _
  %s9 = ssub.s32 1, %s7
  %s10 = scalar_select 0, %s9, %s7
  $region1: #{basis_linear_pallas.1} parent=0
    #allocation2 [shape = 'u8[4096]{0}', space=vmem, size = 0x1000, scoped, tag = 'input window, operand 0, single buffered']
    #allocation3 [shape = 's32[1]{0}', space=sflag, size = 0x4, scoped, tag = 'scoped memory for basis_linear_pallas.1']
    #allocation4 [shape = 's32[1]{0}', space=sflag, size = 0x4, scoped, tag = 'scoped memory for basis_linear_pallas.1']
    #allocation5 [shape = 'u8[81920]{0}', space=vmem, size = 0x14000, scoped, tag = 'input window, operand 1, single buffered']
    #allocation6 [shape = 's32[1]{0}', space=sflag, size = 0x4, scoped, tag = 'scoped memory for basis_linear_pallas.1']
    #allocation7 [shape = 'u8[81920]{0}', space=vmem, size = 0x14000, scoped, tag = 'input window, operand 2, single buffered']
    #allocation8 [shape = 'u8[327680]{0}', space=vmem, size = 0x50000, scoped, tag = 'input window, operand 3, single buffered']
    #allocation9 [shape = 's32[1]{0}', space=sflag, size = 0x4, scoped, tag = 'scoped memory for basis_linear_pallas.1']
    #allocation10 [shape = 'u8[16384]{0}', space=vmem, size = 0x4000, scoped, tag = 'input window, operand 4, single buffered']
    #allocation11 [shape = 'u8[4096]{0}', space=vmem, size = 0x1000, scoped, tag = 'output window, operand 0, single buffered']
    %11 = vsyncpa [#allocation3], 0
    %12 = vsyncpa [#allocation6], 0
    %13 = vsyncpa [#allocation9], 0
    %14 = vsyncpa [#allocation4], 0
    // Predicated region
    $region2: #{basis_linear_pallas.1} parent=1 // pred_check
      _
    $region3: #{basis_linear_pallas.1} parent=1 // pred_check_branch
      %16 = sbr.rel (0) target = $region5
    $region4: #{basis_linear_pallas.1} parent=1 // pred_region
      %s18 = ssub.s32 128, 128
      %19 = vsyncadd [#allocation3], %s18
      %s21 = sshll.u32 [#allocation2], 4
      %s22 = int_to_ptr.vmem [resolvable:$true] %s21
      %24 = dma.hbm_to_vmem [thread:$0]  %s0, 128, %s22, [#allocation3]
    $region5: #{basis_linear_pallas.1} parent=1 // pred_fallthru
      _
    // Predicated region
    $region6: #{basis_linear_pallas.1} parent=1 // pred_check
      _
    $region7: #{basis_linear_pallas.1} parent=1 // pred_check_branch
      %26 = sbr.rel (0) target = $region9
    $region8: #{basis_linear_pallas.1} parent=1 // pred_region
      %s28 = ssub.s32 2560, 2560
      %29 = vsyncadd [#allocation6], %s28
      %s30 = sshll.u32 [#allocation5], 4
      %s31 = int_to_ptr.vmem [resolvable:$true] %s30
      %36 = dma.hbm_to_vmem [thread:$0]  %s1, 2560, %s31, [#allocation6], 640, 640, 40
    $region9: #{basis_linear_pallas.1} parent=1 // pred_fallthru
      _
    // Predicated region
    $region10: #{basis_linear_pallas.1} parent=1 // pred_check
      _
    $region11: #{basis_linear_pallas.1} parent=1 // pred_check_branch
      %38 = sbr.rel (0) target = $region13
    $region12: #{basis_linear_pallas.1} parent=1 // pred_region
      %s40 = ssub.s32 2560, 2560
      %41 = vsyncadd [#allocation6], %s40
      %s42 = sshll.u32 [#allocation7], 4
      %s43 = int_to_ptr.vmem [resolvable:$true] %s42
      %48 = dma.hbm_to_vmem [thread:$0]  %s2, 2560, %s43, [#allocation6], 640, 640, 40
    $region13: #{basis_linear_pallas.1} parent=1 // pred_fallthru
      _
    // Predicated region
    $region14: #{basis_linear_pallas.1} parent=1 // pred_check
      _
    $region15: #{basis_linear_pallas.1} parent=1 // pred_check_branch
      %50 = sbr.rel (0) target = $region17
    $region16: #{basis_linear_pallas.1} parent=1 // pred_region
      %s52 = ssub.s32 10240, 10240
      %53 = vsyncadd [#allocation9], %s52
      %s54 = sshll.u32 [#allocation8], 4
      %s55 = int_to_ptr.vmem [resolvable:$true] %s54
      %60 = dma.hbm_to_vmem [thread:$0]  %s3, 10240, %s55, [#allocation9], 128, 128, 8
    $region17: #{basis_linear_pallas.1} parent=1 // pred_fallthru
      _
    // Predicated region
    $region18: #{basis_linear_pallas.1} parent=1 // pred_check
      _
    $region19: #{basis_linear_pallas.1} parent=1 // pred_check_branch
      %62 = sbr.rel (0) target = $region21
    $region20: #{basis_linear_pallas.1} parent=1 // pred_region
      %s64 = ssub.s32 512, 512
      %65 = vsyncadd [#allocation9], %s64
      %s66 = sshll.u32 [#allocation10], 4
      %s67 = int_to_ptr.vmem [resolvable:$true] %s66
      %72 = dma.hbm_to_vmem [thread:$0]  %s4, 512, %s67, [#allocation9], 128, 128, 8
    $region21: #{basis_linear_pallas.1} parent=1 // pred_fallthru
      _
    // Predicated region
    $region22: #{basis_linear_pallas.1} parent=1 // pred_check
      _
    $region23: #{basis_linear_pallas.1} parent=1 // pred_check_branch
      %74 = sbr.rel (0) target = $region25
    $region24: #{basis_linear_pallas.1} parent=1 // pred_region
      _
    $region25: #{basis_linear_pallas.1} parent=1 // pred_fallthru
      _
    // Predicated region
    $region26: #{basis_linear_pallas.1} parent=1 // pred_check
      _
    $region27: #{basis_linear_pallas.1} parent=1 // pred_check_branch
      %76 = sbr.rel (0) target = $region29
    $region28: #{basis_linear_pallas.1} parent=1 // pred_region
      %77 = dma.done [#allocation3], 128
    $region29: #{basis_linear_pallas.1} parent=1 // pred_fallthru
      _
    // Predicated region
    $region30: #{basis_linear_pallas.1} parent=1 // pred_check
      _
    $region31: #{basis_linear_pallas.1} parent=1 // pred_check_branch
      %79 = sbr.rel (0) target = $region33
    $region32: #{basis_linear_pallas.1} parent=1 // pred_region
      %80 = dma.done [#allocation6], 2560
    $region33: #{basis_linear_pallas.1} parent=1 // pred_fallthru
      _
    // Predicated region
    $region34: #{basis_linear_pallas.1} parent=1 // pred_check
      _
    $region35: #{basis_linear_pallas.1} parent=1 // pred_check_branch
      %82 = sbr.rel (0) target = $region37
    $region36: #{basis_linear_pallas.1} parent=1 // pred_region
      %83 = dma.done [#allocation6], 2560
    $region37: #{basis_linear_pallas.1} parent=1 // pred_fallthru
      _
    // Predicated region
    $region38: #{basis_linear_pallas.1} parent=1 // pred_check
      _
    $region39: #{basis_linear_pallas.1} parent=1 // pred_check_branch
      %85 = sbr.rel (0) target = $region41
    $region40: #{basis_linear_pallas.1} parent=1 // pred_region
      %86 = dma.done [#allocation9], 10240
    $region41: #{basis_linear_pallas.1} parent=1 // pred_fallthru
      _
    // Predicated region
    $region42: #{basis_linear_pallas.1} parent=1 // pred_check
      _
    $region43: #{basis_linear_pallas.1} parent=1 // pred_check_branch
      %88 = sbr.rel (0) target = $region45
    $region44: #{basis_linear_pallas.1} parent=1 // pred_region
      %89 = dma.done [#allocation9], 512
    $region45: #{basis_linear_pallas.1} parent=1 // pred_fallthru
      _
    %v90 = vld [vmem:[#allocation2] sm:$0xff]
    %v91 = vld [vmem:[#allocation5] sm:$0xff]
    %v92 = vld [vmem:[#allocation5 + $0x8] sm:$0xff]
    %v93 = vld [vmem:[#allocation5 + $0x10] sm:$0xff]
    %v94 = vld [vmem:[#allocation5 + $0x18] sm:$0xff]
    %v95 = vld [vmem:[#allocation5 + $0x20] sm:$0xff]
    %v96 = vld [vmem:[#allocation5 + $0x28] sm:$0xff]
    %v97 = vld [vmem:[#allocation5 + $0x30] sm:$0xff]
    %v98 = vld [vmem:[#allocation5 + $0x38] sm:$0xff]
    %v99 = vld [vmem:[#allocation5 + $0x40] sm:$0xff]
    %v100 = vld [vmem:[#allocation5 + $0x48] sm:$0xff]
    %v101 = vld [vmem:[#allocation5 + $0x50] sm:$0xff]
    %v102 = vld [vmem:[#allocation5 + $0x58] sm:$0xff]
    %v103 = vld [vmem:[#allocation5 + $0x60] sm:$0xff]
    %v104 = vld [vmem:[#allocation5 + $0x68] sm:$0xff]
    %v105 = vld [vmem:[#allocation5 + $0x70] sm:$0xff]
    %v106 = vld [vmem:[#allocation5 + $0x78] sm:$0xff]
    %v107 = vld [vmem:[#allocation5 + $0x80] sm:$0xff]
    %v108 = vld [vmem:[#allocation5 + $0x88] sm:$0xff]
    %v109 = vld [vmem:[#allocation5 + $0x90] sm:$0xff]
    %v110 = vld [vmem:[#allocation5 + $0x98] sm:$0xff]
    %vm111 = vcmask 261120
    %v113 = vsel %vm111, %v90, 0
    %115 = vmatprep.subr.mxu0 %v92
    %116 = vmatpush1.msra.mxu0 %v91
    %117 = vmatprep.subr.mxu0 %v97
    %118 = vmatpush1.msra.mxu0 %v96
    %119 = vmatprep.subr.mxu0 %v102
    %120 = vmatpush1.msra.mxu0 %v101
    %121 = vmatprep.subr.mxu0 %v107
    %122 = vmatpush1.msra.mxu0 %v106
    %123 = vmatprep.subr.mxu0 0.0
    %124 = vmatpush1.msra.mxu0 0.0
    %125 = vmatprep.subr.mxu0 0.0
    %126 = vmatpush1.msra.mxu0 0.0
    %127 = vmatprep.subr.mxu0 0.0
    %128 = vmatpush1.msra.mxu0 0.0
    %129 = vmatprep.subr.mxu0 0.0
    %130 = vmatpush1.msra.mxu0 0.0
    %131 = vmatprep.subr.mxu0 0.0
    %132 = vmatpush1.msra.mxu0 0.0
    %133 = vmatprep.subr.mxu0 0.0
    %134 = vmatpush1.msra.mxu0 0.0
    %135 = vmatprep.subr.mxu0 0.0
    %136 = vmatpush1.msra.mxu0 0.0
    %137 = vmatprep.subr.mxu0 0.0
    %138 = vmatpush1.msra.mxu0 0.0
    %139 = vmatprep.subr.mxu0 0.0
    %140 = vmatpush1.msra.mxu0 0.0
    %141 = vmatprep.subr.mxu0 0.0
    %142 = vmatpush1.msra.mxu0 0.0
    %143 = vmatprep.subr.mxu0 0.0
    %144 = vmatpush1.msra.mxu0 0.0
    %145 = vmatprep.subr.mxu0 0.0
    %146 = vmatpush1.msra.mxu0 0.0
    %147 = vmatprep.subr.mxu0 0.0
    %148 = vmatpush1.msra.mxu0 0.0
    %149 = vmatprep.subr.mxu0 0.0
    %150 = vmatpush1.msra.mxu0 0.0
    %151 = vmatprep.subr.mxu0 0.0
    %152 = vmatpush1.msra.mxu0 0.0
    %153 = vmatprep.subr.mxu0 0.0
    %154 = vmatpush1.msra.mxu0 0.0
    %155 = vmatprep.subr.mxu0 0.0
    %156 = vmatpush1.msra.mxu0 0.0
    %157 = vmatprep.subr.mxu0 0.0
    %158 = vmatpush1.msra.mxu0 0.0
    %159 = vmatprep.subr.mxu0 0.0
    %160 = vmatpush1.msra.mxu0 0.0
    %161 = vmatprep.subr.mxu0 0.0
    %162 = vmatpush1.msra.mxu0 0.0
    %163 = vmatprep.subr.mxu0 0.0
    %164 = vmatpush1.msra.mxu0 0.0
    %165 = vmatprep.subr.mxu0 0.0
    %166 = vmatpush1.msra.mxu0 0.0
    %167 = vmatprep.subr.mxu0 0.0
    %168 = vmatpush1.msra.mxu0 0.0
    %169 = vmatprep.subr.mxu0 0.0
    %170 = vmatpush1.msra.mxu0 0.0
    %171 = vmatprep.subr.mxu0 0.0
    %172 = vmatpush1.msra.mxu0 0.0
    %173 = vmatprep.subr.mxu0 0.0
    %174 = vmatpush1.msra.mxu0 0.0
    %175 = vmatprep.subr.mxu0 0.0
    %176 = vmatpush1.msra.mxu0 0.0
    %177 = vmatprep.subr.mxu0 0.0
    %178 = vmatpush1.msra.mxu0 0.0
    %179 = vmatprep.mubr.f32.mxu0 0.0
    %180 = vmatmul.mubr.f32.gmra.mrb[0].mxu0 %v113
    %v181 = vpop.f32.mrb[0].mxu0
    %v182 = vadd.f32 0.0, %v181
    %v183 = vpop.f32.mrb[0].mxu0
    %v184 = vadd.f32 0.0, %v183
    %185 = vdwg.mxu0
    %186 = vmatprep.subr.mxu0 %v94
    %187 = vmatpush1.msra.mxu0 %v93
    %188 = vmatprep.subr.mxu0 %v99
    %189 = vmatpush1.msra.mxu0 %v98
    %190 = vmatprep.subr.mxu0 %v104
    %191 = vmatpush1.msra.mxu0 %v103
    %192 = vmatprep.subr.mxu0 %v109
    %193 = vmatpush1.msra.mxu0 %v108
    %194 = vmatprep.subr.mxu0 0.0
    %195 = vmatpush1.msra.mxu0 0.0
    %196 = vmatprep.subr.mxu0 0.0
    %197 = vmatpush1.msra.mxu0 0.0
    %198 = vmatprep.subr.mxu0 0.0
    %199 = vmatpush1.msra.mxu0 0.0
    %200 = vmatprep.subr.mxu0 0.0
    %201 = vmatpush1.msra.mxu0 0.0
    %202 = vmatprep.subr.mxu0 0.0
    %203 = vmatpush1.msra.mxu0 0.0
    %204 = vmatprep.subr.mxu0 0.0
    %205 = vmatpush1.msra.mxu0 0.0
    %206 = vmatprep.subr.mxu0 0.0
    %207 = vmatpush1.msra.mxu0 0.0
    %208 = vmatprep.subr.mxu0 0.0
    %209 = vmatpush1.msra.mxu0 0.0
    %210 = vmatprep.subr.mxu0 0.0
    %211 = vmatpush1.msra.mxu0 0.0
    %212 = vmatprep.subr.mxu0 0.0
    %213 = vmatpush1.msra.mxu0 0.0
    %214 = vmatprep.subr.mxu0 0.0
    %215 = vmatpush1.msra.mxu0 0.0
    %216 = vmatprep.subr.mxu0 0.0
    %217 = vmatpush1.msra.mxu0 0.0
    %218 = vmatprep.subr.mxu0 0.0
    %219 = vmatpush1.msra.mxu0 0.0
    %220 = vmatprep.subr.mxu0 0.0
    %221 = vmatpush1.msra.mxu0 0.0
    %222 = vmatprep.subr.mxu0 0.0
    %223 = vmatpush1.msra.mxu0 0.0
    %224 = vmatprep.subr.mxu0 0.0
    %225 = vmatpush1.msra.mxu0 0.0
    %226 = vmatprep.subr.mxu0 0.0
    %227 = vmatpush1.msra.mxu0 0.0
    %228 = vmatprep.subr.mxu0 0.0
    %229 = vmatpush1.msra.mxu0 0.0
    %230 = vmatprep.subr.mxu0 0.0
    %231 = vmatpush1.msra.mxu0 0.0
    %232 = vmatprep.subr.mxu0 0.0
    %233 = vmatpush1.msra.mxu0 0.0
    %234 = vmatprep.subr.mxu0 0.0
    %235 = vmatpush1.msra.mxu0 0.0
    %236 = vmatprep.subr.mxu0 0.0
    %237 = vmatpush1.msra.mxu0 0.0
    %238 = vmatprep.subr.mxu0 0.0
    %239 = vmatpush1.msra.mxu0 0.0
    %240 = vmatprep.subr.mxu0 0.0
    %241 = vmatpush1.msra.mxu0 0.0
    %242 = vmatprep.subr.mxu0 0.0
    %243 = vmatpush1.msra.mxu0 0.0
    %244 = vmatprep.subr.mxu0 0.0
    %245 = vmatpush1.msra.mxu0 0.0
    %246 = vmatprep.subr.mxu0 0.0
    %247 = vmatpush1.msra.mxu0 0.0
    %248 = vmatprep.subr.mxu0 0.0
    %249 = vmatpush1.msra.mxu0 0.0
    %250 = vmatprep.mubr.f32.mxu0 0.0
    %251 = vmatmul.mubr.f32.gmra.mrb[0].mxu0 %v113
    %v252 = vpop.f32.mrb[0].mxu0
    %v253 = vadd.f32 0.0, %v252
    %v254 = vpop.f32.mrb[0].mxu0
    %v255 = vadd.f32 0.0, %v254
    %256 = vdwg.mxu0
    %257 = vmatprep.subr.mxu0 0.0
    %258 = vmatpush1.msra.mxu0 %v95
    %259 = vmatprep.subr.mxu0 0.0
    %260 = vmatpush1.msra.mxu0 %v100
    %261 = vmatprep.subr.mxu0 0.0
    %262 = vmatpush1.msra.mxu0 %v105
    %263 = vmatprep.subr.mxu0 0.0
    %264 = vmatpush1.msra.mxu0 %v110
    %265 = vmatprep.subr.mxu0 0.0
    %266 = vmatpush1.msra.mxu0 0.0
    %267 = vmatprep.subr.mxu0 0.0
    %268 = vmatpush1.msra.mxu0 0.0
    %269 = vmatprep.subr.mxu0 0.0
    %270 = vmatpush1.msra.mxu0 0.0
    %271 = vmatprep.subr.mxu0 0.0
    %272 = vmatpush1.msra.mxu0 0.0
    %273 = vmatprep.subr.mxu0 0.0
    %274 = vmatpush1.msra.mxu0 0.0
    %275 = vmatprep.subr.mxu0 0.0
    %276 = vmatpush1.msra.mxu0 0.0
    %277 = vmatprep.subr.mxu0 0.0
    %278 = vmatpush1.msra.mxu0 0.0
    %279 = vmatprep.subr.mxu0 0.0
    %280 = vmatpush1.msra.mxu0 0.0
    %281 = vmatprep.subr.mxu0 0.0
    %282 = vmatpush1.msra.mxu0 0.0
    %283 = vmatprep.subr.mxu0 0.0
    %284 = vmatpush1.msra.mxu0 0.0
    %285 = vmatprep.subr.mxu0 0.0
    %286 = vmatpush1.msra.mxu0 0.0
    %287 = vmatprep.subr.mxu0 0.0
    %288 = vmatpush1.msra.mxu0 0.0
    %289 = vmatprep.subr.mxu0 0.0
    %290 = vmatpush1.msra.mxu0 0.0
    %291 = vmatprep.subr.mxu0 0.0
    %292 = vmatpush1.msra.mxu0 0.0
    %293 = vmatprep.subr.mxu0 0.0
    %294 = vmatpush1.msra.mxu0 0.0
    %295 = vmatprep.subr.mxu0 0.0
    %296 = vmatpush1.msra.mxu0 0.0
    %297 = vmatprep.subr.mxu0 0.0
    %298 = vmatpush1.msra.mxu0 0.0
    %299 = vmatprep.subr.mxu0 0.0
    %300 = vmatpush1.msra.mxu0 0.0
    %301 = vmatprep.subr.mxu0 0.0
    %302 = vmatpush1.msra.mxu0 0.0
    %303 = vmatprep.subr.mxu0 0.0
    %304 = vmatpush1.msra.mxu0 0.0
    %305 = vmatprep.subr.mxu0 0.0
    %306 = vmatpush1.msra.mxu0 0.0
    %307 = vmatprep.subr.mxu0 0.0
    %308 = vmatpush1.msra.mxu0 0.0
    %309 = vmatprep.subr.mxu0 0.0
    %310 = vmatpush1.msra.mxu0 0.0
    %311 = vmatprep.subr.mxu0 0.0
    %312 = vmatpush1.msra.mxu0 0.0
    %313 = vmatprep.subr.mxu0 0.0
    %314 = vmatpush1.msra.mxu0 0.0
    %315 = vmatprep.subr.mxu0 0.0
    %316 = vmatpush1.msra.mxu0 0.0
    %317 = vmatprep.subr.mxu0 0.0
    %318 = vmatpush1.msra.mxu0 0.0
    %319 = vmatprep.subr.mxu0 0.0
    %320 = vmatpush1.msra.mxu0 0.0
    %321 = vmatprep.mubr.f32.mxu0 0.0
    %322 = vmatmul.mubr.f32.gmra.mrb[0].mxu0 %v113
    %v323 = vpop.f32.mrb[0].mxu0
    %v324 = vadd.f32 0.0, %v323
    %v325 = vpop.f32.mrb[0].mxu0
    %326 = vdwg.mxu0
    %v327 = vld [vmem:[#allocation7] sm:$0xff]
    %v328 = vld [vmem:[#allocation7 + $0x8] sm:$0xff]
    %v329 = vld [vmem:[#allocation7 + $0x10] sm:$0xff]
    %v330 = vld [vmem:[#allocation7 + $0x18] sm:$0xff]
    %v331 = vld [vmem:[#allocation7 + $0x20] sm:$0xff]
    %v332 = vld [vmem:[#allocation7 + $0x28] sm:$0xff]
    %v333 = vld [vmem:[#allocation7 + $0x30] sm:$0xff]
    %v334 = vld [vmem:[#allocation7 + $0x38] sm:$0xff]
    %v335 = vld [vmem:[#allocation7 + $0x40] sm:$0xff]
    %v336 = vld [vmem:[#allocation7 + $0x48] sm:$0xff]
    %v337 = vld [vmem:[#allocation7 + $0x50] sm:$0xff]
    %v338 = vld [vmem:[#allocation7 + $0x58] sm:$0xff]
    %v339 = vld [vmem:[#allocation7 + $0x60] sm:$0xff]
    %v340 = vld [vmem:[#allocation7 + $0x68] sm:$0xff]
    %v341 = vld [vmem:[#allocation7 + $0x70] sm:$0xff]
    %v342 = vld [vmem:[#allocation7 + $0x78] sm:$0xff]
    %v343 = vld [vmem:[#allocation7 + $0x80] sm:$0xff]
    %v344 = vld [vmem:[#allocation7 + $0x88] sm:$0xff]
    %v345 = vld [vmem:[#allocation7 + $0x90] sm:$0xff]
    %v346 = vld [vmem:[#allocation7 + $0x98] sm:$0xff]
    %347 = vmatprep.subr.mxu0 %v328
    %348 = vmatpush1.msra.mxu0 %v327
    %349 = vmatprep.subr.mxu0 %v333
    %350 = vmatpush1.msra.mxu0 %v332
    %351 = vmatprep.subr.mxu0 %v338
    %352 = vmatpush1.msra.mxu0 %v337
    %353 = vmatprep.subr.mxu0 %v343
    %354 = vmatpush1.msra.mxu0 %v342
    %355 = vmatprep.subr.mxu0 0.0
    %356 = vmatpush1.msra.mxu0 0.0
    %357 = vmatprep.subr.mxu0 0.0
    %358 = vmatpush1.msra.mxu0 0.0
    %359 = vmatprep.subr.mxu0 0.0
    %360 = vmatpush1.msra.mxu0 0.0
    %361 = vmatprep.subr.mxu0 0.0
    %362 = vmatpush1.msra.mxu0 0.0
    %363 = vmatprep.subr.mxu0 0.0
    %364 = vmatpush1.msra.mxu0 0.0
    %365 = vmatprep.subr.mxu0 0.0
    %366 = vmatpush1.msra.mxu0 0.0
    %367 = vmatprep.subr.mxu0 0.0
    %368 = vmatpush1.msra.mxu0 0.0
    %369 = vmatprep.subr.mxu0 0.0
    %370 = vmatpush1.msra.mxu0 0.0
    %371 = vmatprep.subr.mxu0 0.0
    %372 = vmatpush1.msra.mxu0 0.0
    %373 = vmatprep.subr.mxu0 0.0
    %374 = vmatpush1.msra.mxu0 0.0
    %375 = vmatprep.subr.mxu0 0.0
    %376 = vmatpush1.msra.mxu0 0.0
    %377 = vmatprep.subr.mxu0 0.0
    %378 = vmatpush1.msra.mxu0 0.0
    %379 = vmatprep.subr.mxu0 0.0
    %380 = vmatpush1.msra.mxu0 0.0
    %381 = vmatprep.subr.mxu0 0.0
    %382 = vmatpush1.msra.mxu0 0.0
    %383 = vmatprep.subr.mxu0 0.0
    %384 = vmatpush1.msra.mxu0 0.0
    %385 = vmatprep.subr.mxu0 0.0
    %386 = vmatpush1.msra.mxu0 0.0
    %387 = vmatprep.subr.mxu0 0.0
    %388 = vmatpush1.msra.mxu0 0.0
    %389 = vmatprep.subr.mxu0 0.0
    %390 = vmatpush1.msra.mxu0 0.0
    %391 = vmatprep.subr.mxu0 0.0
    %392 = vmatpush1.msra.mxu0 0.0
    %393 = vmatprep.subr.mxu0 0.0
    %394 = vmatpush1.msra.mxu0 0.0
    %395 = vmatprep.subr.mxu0 0.0
    %396 = vmatpush1.msra.mxu0 0.0
    %397 = vmatprep.subr.mxu0 0.0
    %398 = vmatpush1.msra.mxu0 0.0
    %399 = vmatprep.subr.mxu0 0.0
    %400 = vmatpush1.msra.mxu0 0.0
    %401 = vmatprep.subr.mxu0 0.0
    %402 = vmatpush1.msra.mxu0 0.0
    %403 = vmatprep.subr.mxu0 0.0
    %404 = vmatpush1.msra.mxu0 0.0
    %405 = vmatprep.subr.mxu0 0.0
    %406 = vmatpush1.msra.mxu0 0.0
    %407 = vmatprep.subr.mxu0 0.0
    %408 = vmatpush1.msra.mxu0 0.0
    %409 = vmatprep.subr.mxu0 0.0
    %410 = vmatpush1.msra.mxu0 0.0
    %411 = vmatprep.mubr.f32.mxu0 0.0
    %412 = vmatmul.mubr.f32.gmra.mrb[0].mxu0 %v113
    %v413 = vpop.f32.mrb[0].mxu0
    %v414 = vadd.f32 0.0, %v413
    %v415 = vpop.f32.mrb[0].mxu0
    %v416 = vadd.f32 0.0, %v415
    %417 = vdwg.mxu0
    %418 = vmatprep.subr.mxu0 %v330
    %419 = vmatpush1.msra.mxu0 %v329
    %420 = vmatprep.subr.mxu0 %v335
    %421 = vmatpush1.msra.mxu0 %v334
    %422 = vmatprep.subr.mxu0 %v340
    %423 = vmatpush1.msra.mxu0 %v339
    %424 = vmatprep.subr.mxu0 %v345
    %425 = vmatpush1.msra.mxu0 %v344
    %426 = vmatprep.subr.mxu0 0.0
    %427 = vmatpush1.msra.mxu0 0.0
    %428 = vmatprep.subr.mxu0 0.0
    %429 = vmatpush1.msra.mxu0 0.0
    %430 = vmatprep.subr.mxu0 0.0
    %431 = vmatpush1.msra.mxu0 0.0
    %432 = vmatprep.subr.mxu0 0.0
    %433 = vmatpush1.msra.mxu0 0.0
    %434 = vmatprep.subr.mxu0 0.0
    %435 = vmatpush1.msra.mxu0 0.0
    %436 = vmatprep.subr.mxu0 0.0
    %437 = vmatpush1.msra.mxu0 0.0
    %438 = vmatprep.subr.mxu0 0.0
    %439 = vmatpush1.msra.mxu0 0.0
    %440 = vmatprep.subr.mxu0 0.0
    %441 = vmatpush1.msra.mxu0 0.0
    %442 = vmatprep.subr.mxu0 0.0
    %443 = vmatpush1.msra.mxu0 0.0
    %444 = vmatprep.subr.mxu0 0.0
    %445 = vmatpush1.msra.mxu0 0.0
    %446 = vmatprep.subr.mxu0 0.0
    %447 = vmatpush1.msra.mxu0 0.0
    %448 = vmatprep.subr.mxu0 0.0
    %449 = vmatpush1.msra.mxu0 0.0
    %450 = vmatprep.subr.mxu0 0.0
    %451 = vmatpush1.msra.mxu0 0.0
    %452 = vmatprep.subr.mxu0 0.0
    %453 = vmatpush1.msra.mxu0 0.0
    %454 = vmatprep.subr.mxu0 0.0
    %455 = vmatpush1.msra.mxu0 0.0
    %456 = vmatprep.subr.mxu0 0.0
    %457 = vmatpush1.msra.mxu0 0.0
    %458 = vmatprep.subr.mxu0 0.0
    %459 = vmatpush1.msra.mxu0 0.0
    %460 = vmatprep.subr.mxu0 0.0
    %461 = vmatpush1.msra.mxu0 0.0
    %462 = vmatprep.subr.mxu0 0.0
    %463 = vmatpush1.msra.mxu0 0.0
    %464 = vmatprep.subr.mxu0 0.0
    %465 = vmatpush1.msra.mxu0 0.0
    %466 = vmatprep.subr.mxu0 0.0
    %467 = vmatpush1.msra.mxu0 0.0
    %468 = vmatprep.subr.mxu0 0.0
    %469 = vmatpush1.msra.mxu0 0.0
    %470 = vmatprep.subr.mxu0 0.0
    %471 = vmatpush1.msra.mxu0 0.0
    %472 = vmatprep.subr.mxu0 0.0
    %473 = vmatpush1.msra.mxu0 0.0
    %474 = vmatprep.subr.mxu0 0.0
    %475 = vmatpush1.msra.mxu0 0.0
    %476 = vmatprep.subr.mxu0 0.0
    %477 = vmatpush1.msra.mxu0 0.0
    %478 = vmatprep.subr.mxu0 0.0
    %479 = vmatpush1.msra.mxu0 0.0
    %480 = vmatprep.subr.mxu0 0.0
    %481 = vmatpush1.msra.mxu0 0.0
    %482 = vmatprep.mubr.f32.mxu0 0.0
    %483 = vmatmul.mubr.f32.gmra.mrb[0].mxu0 %v113
    %v484 = vpop.f32.mrb[0].mxu0
    %v485 = vadd.f32 0.0, %v484
    %v486 = vpop.f32.mrb[0].mxu0
    %v487 = vadd.f32 0.0, %v486
    %488 = vdwg.mxu0
    %489 = vmatprep.subr.mxu0 0.0
    %490 = vmatpush1.msra.mxu0 %v331
    %491 = vmatprep.subr.mxu0 0.0
    %492 = vmatpush1.msra.mxu0 %v336
    %493 = vmatprep.subr.mxu0 0.0
    %494 = vmatpush1.msra.mxu0 %v341
    %495 = vmatprep.subr.mxu0 0.0
    %496 = vmatpush1.msra.mxu0 %v346
    %497 = vmatprep.subr.mxu0 0.0
    %498 = vmatpush1.msra.mxu0 0.0
    %499 = vmatprep.subr.mxu0 0.0
    %500 = vmatpush1.msra.mxu0 0.0
    %501 = vmatprep.subr.mxu0 0.0
    %502 = vmatpush1.msra.mxu0 0.0
    %503 = vmatprep.subr.mxu0 0.0
    %504 = vmatpush1.msra.mxu0 0.0
    %505 = vmatprep.subr.mxu0 0.0
    %506 = vmatpush1.msra.mxu0 0.0
    %507 = vmatprep.subr.mxu0 0.0
    %508 = vmatpush1.msra.mxu0 0.0
    %509 = vmatprep.subr.mxu0 0.0
    %510 = vmatpush1.msra.mxu0 0.0
    %511 = vmatprep.subr.mxu0 0.0
    %512 = vmatpush1.msra.mxu0 0.0
    %513 = vmatprep.subr.mxu0 0.0
    %514 = vmatpush1.msra.mxu0 0.0
    %515 = vmatprep.subr.mxu0 0.0
    %516 = vmatpush1.msra.mxu0 0.0
    %517 = vmatprep.subr.mxu0 0.0
    %518 = vmatpush1.msra.mxu0 0.0
    %519 = vmatprep.subr.mxu0 0.0
    %520 = vmatpush1.msra.mxu0 0.0
    %521 = vmatprep.subr.mxu0 0.0
    %522 = vmatpush1.msra.mxu0 0.0
    %523 = vmatprep.subr.mxu0 0.0
    %524 = vmatpush1.msra.mxu0 0.0
    %525 = vmatprep.subr.mxu0 0.0
    %526 = vmatpush1.msra.mxu0 0.0
    %527 = vmatprep.subr.mxu0 0.0
    %528 = vmatpush1.msra.mxu0 0.0
    %529 = vmatprep.subr.mxu0 0.0
    %530 = vmatpush1.msra.mxu0 0.0
    %531 = vmatprep.subr.mxu0 0.0
    %532 = vmatpush1.msra.mxu0 0.0
    %533 = vmatprep.subr.mxu0 0.0
    %534 = vmatpush1.msra.mxu0 0.0
    %535 = vmatprep.subr.mxu0 0.0
    %536 = vmatpush1.msra.mxu0 0.0
    %537 = vmatprep.subr.mxu0 0.0
    %538 = vmatpush1.msra.mxu0 0.0
    %539 = vmatprep.subr.mxu0 0.0
    %540 = vmatpush1.msra.mxu0 0.0
    %541 = vmatprep.subr.mxu0 0.0
    %542 = vmatpush1.msra.mxu0 0.0
    %543 = vmatprep.subr.mxu0 0.0
    %544 = vmatpush1.msra.mxu0 0.0
    %545 = vmatprep.subr.mxu0 0.0
    %546 = vmatpush1.msra.mxu0 0.0
    %547 = vmatprep.subr.mxu0 0.0
    %548 = vmatpush1.msra.mxu0 0.0
    %549 = vmatprep.subr.mxu0 0.0
    %550 = vmatpush1.msra.mxu0 0.0
    %551 = vmatprep.subr.mxu0 0.0
    %552 = vmatpush1.msra.mxu0 0.0
    %553 = vmatprep.mubr.f32.mxu0 0.0
    %554 = vmatmul.mubr.f32.gmra.mrb[0].mxu0 %v113
    %v555 = vpop.f32.mrb[0].mxu0
    %v556 = vadd.f32 0.0, %v555
    %v557 = vpop.f32.mrb[0].mxu0
    %558 = vdwg.mxu0
    %v559 = vmul.f32 %v182, %v414
    %v560 = vmul.f32 %v184, %v416
    %v561 = vmul.f32 %v253, %v485
    %v562 = vmul.f32 %v255, %v487
    %v563 = vmul.f32 %v324, %v556
    %v564 = vld [vmem:[#allocation8] sm:$0xff]
    %v565 = vld [vmem:[#allocation8 + $0x8] sm:$0xff]
    %v566 = vld [vmem:[#allocation8 + $0x10] sm:$0xff]
    %v567 = vld [vmem:[#allocation8 + $0x18] sm:$0xff]
    %v568 = vld [vmem:[#allocation8 + $0x20] sm:$0xff]
    %v569 = vld [vmem:[#allocation8 + $0x28] sm:$0xff]
    %v570 = vld [vmem:[#allocation8 + $0x30] sm:$0xff]
    %v571 = vld [vmem:[#allocation8 + $0x38] sm:$0xff]
    %v572 = vld [vmem:[#allocation8 + $0x40] sm:$0xff]
    %v573 = vld [vmem:[#allocation8 + $0x48] sm:$0xff]
    %v574 = vld [vmem:[#allocation8 + $0x50] sm:$0xff]
    %v575 = vld [vmem:[#allocation8 + $0x58] sm:$0xff]
    %v576 = vld [vmem:[#allocation8 + $0x60] sm:$0xff]
    %v577 = vld [vmem:[#allocation8 + $0x68] sm:$0xff]
    %v578 = vld [vmem:[#allocation8 + $0x70] sm:$0xff]
    %v579 = vld [vmem:[#allocation8 + $0x78] sm:$0xff]
    %v580 = vld [vmem:[#allocation8 + $0x80] sm:$0xff]
    %v581 = vld [vmem:[#allocation8 + $0x88] sm:$0xff]
    %v582 = vld [vmem:[#allocation8 + $0x90] sm:$0xff]
    %v583 = vld [vmem:[#allocation8 + $0x98] sm:$0xff]
    %v584 = vld [vmem:[#allocation8 + $0xa0] sm:$0xff]
    %v585 = vld [vmem:[#allocation8 + $0xa8] sm:$0xff]
    %v586 = vld [vmem:[#allocation8 + $0xb0] sm:$0xff]
    %v587 = vld [vmem:[#allocation8 + $0xb8] sm:$0xff]
    %v588 = vld [vmem:[#allocation8 + $0xc0] sm:$0xff]
    %v589 = vld [vmem:[#allocation8 + $0xc8] sm:$0xff]
    %v590 = vld [vmem:[#allocation8 + $0xd0] sm:$0xff]
    %v591 = vld [vmem:[#allocation8 + $0xd8] sm:$0xff]
    %v592 = vld [vmem:[#allocation8 + $0xe0] sm:$0xff]
    %v593 = vld [vmem:[#allocation8 + $0xe8] sm:$0xff]
    %v594 = vld [vmem:[#allocation8 + $0xf0] sm:$0xff]
    %v595 = vld [vmem:[#allocation8 + $0xf8] sm:$0xff]
    %v596 = vld [vmem:[#allocation8 + $0x100] sm:$0xff]
    %v597 = vld [vmem:[#allocation8 + $0x108] sm:$0xff]
    %v598 = vld [vmem:[#allocation8 + $0x110] sm:$0xff]
    %v599 = vld [vmem:[#allocation8 + $0x118] sm:$0xff]
    %v600 = vld [vmem:[#allocation8 + $0x120] sm:$0xff]
    %v601 = vld [vmem:[#allocation8 + $0x128] sm:$0xff]
    %v602 = vld [vmem:[#allocation8 + $0x130] sm:$0xff]
    %v603 = vld [vmem:[#allocation8 + $0x138] sm:$0xff]
    %v604 = vld [vmem:[#allocation8 + $0x140] sm:$0xff]
    %v605 = vld [vmem:[#allocation8 + $0x148] sm:$0xff]
    %v606 = vld [vmem:[#allocation8 + $0x150] sm:$0xff]
    %v607 = vld [vmem:[#allocation8 + $0x158] sm:$0xff]
    %v608 = vld [vmem:[#allocation8 + $0x160] sm:$0xff]
    %v609 = vld [vmem:[#allocation8 + $0x168] sm:$0xff]
    %v610 = vld [vmem:[#allocation8 + $0x170] sm:$0xff]
    %v611 = vld [vmem:[#allocation8 + $0x178] sm:$0xff]
    %v612 = vld [vmem:[#allocation8 + $0x180] sm:$0xff]
    %v613 = vld [vmem:[#allocation8 + $0x188] sm:$0xff]
    %v614 = vld [vmem:[#allocation8 + $0x190] sm:$0xff]
    %v615 = vld [vmem:[#allocation8 + $0x198] sm:$0xff]
    %v616 = vld [vmem:[#allocation8 + $0x1a0] sm:$0xff]
    %v617 = vld [vmem:[#allocation8 + $0x1a8] sm:$0xff]
    %v618 = vld [vmem:[#allocation8 + $0x1b0] sm:$0xff]
    %v619 = vld [vmem:[#allocation8 + $0x1b8] sm:$0xff]
    %v620 = vld [vmem:[#allocation8 + $0x1c0] sm:$0xff]
    %v621 = vld [vmem:[#allocation8 + $0x1c8] sm:$0xff]
    %v622 = vld [vmem:[#allocation8 + $0x1d0] sm:$0xff]
    %v623 = vld [vmem:[#allocation8 + $0x1d8] sm:$0xff]
    %v624 = vld [vmem:[#allocation8 + $0x1e0] sm:$0xff]
    %v625 = vld [vmem:[#allocation8 + $0x1e8] sm:$0xff]
    %v626 = vld [vmem:[#allocation8 + $0x1f0] sm:$0xff]
    %v627 = vld [vmem:[#allocation8 + $0x1f8] sm:$0xff]
    %v628 = vld [vmem:[#allocation8 + $0x200] sm:$0xff]
    %v629 = vld [vmem:[#allocation8 + $0x208] sm:$0xff]
    %v630 = vld [vmem:[#allocation8 + $0x210] sm:$0xff]
    %v631 = vld [vmem:[#allocation8 + $0x218] sm:$0xff]
    %v632 = vld [vmem:[#allocation8 + $0x220] sm:$0xff]
    %v633 = vld [vmem:[#allocation8 + $0x228] sm:$0xff]
    %v634 = vld [vmem:[#allocation8 + $0x230] sm:$0xff]
    %v635 = vld [vmem:[#allocation8 + $0x238] sm:$0xff]
    %v636 = vld [vmem:[#allocation8 + $0x240] sm:$0xff]
    %v637 = vld [vmem:[#allocation8 + $0x248] sm:$0xff]
    %v638 = vld [vmem:[#allocation8 + $0x250] sm:$0xff]
    %v639 = vld [vmem:[#allocation8 + $0x258] sm:$0xff]
    %v640 = vld [vmem:[#allocation8 + $0x260] sm:$0xff]
    %v641 = vld [vmem:[#allocation8 + $0x268] sm:$0xff]
    %v642 = vld [vmem:[#allocation8 + $0x270] sm:$0xff]
    %v643 = vld [vmem:[#allocation8 + $0x278] sm:$0xff]
    %v644 = vld [vmem:[#allocation10] sm:$0xff]
    %v645 = vld [vmem:[#allocation10 + $0x8] sm:$0xff]
    %v646 = vld [vmem:[#allocation10 + $0x10] sm:$0xff]
    %v647 = vld [vmem:[#allocation10 + $0x18] sm:$0xff]
    %648 = vmatprep.subr.mxu0 0.0
    %649 = vmatpush1.msra.mxu0 %v644
    %650 = vmatprep.subr.mxu0 0.0
    %651 = vmatpush1.msra.mxu0 %v645
    %652 = vmatprep.subr.mxu0 0.0
    %653 = vmatpush1.msra.mxu0 %v646
    %654 = vmatprep.subr.mxu0 0.0
    %655 = vmatpush1.msra.mxu0 %v647
    %656 = vmatprep.subr.mxu0 0.0
    %657 = vmatpush1.msra.mxu0 0.0
    %658 = vmatprep.subr.mxu0 0.0
    %659 = vmatpush1.msra.mxu0 0.0
    %660 = vmatprep.subr.mxu0 0.0
    %661 = vmatpush1.msra.mxu0 0.0
    %662 = vmatprep.subr.mxu0 0.0
    %663 = vmatpush1.msra.mxu0 0.0
    %664 = vmatprep.subr.mxu0 0.0
    %665 = vmatpush1.msra.mxu0 0.0
    %666 = vmatprep.subr.mxu0 0.0
    %667 = vmatpush1.msra.mxu0 0.0
    %668 = vmatprep.subr.mxu0 0.0
    %669 = vmatpush1.msra.mxu0 0.0
    %670 = vmatprep.subr.mxu0 0.0
    %671 = vmatpush1.msra.mxu0 0.0
    %672 = vmatprep.subr.mxu0 0.0
    %673 = vmatpush1.msra.mxu0 0.0
    %674 = vmatprep.subr.mxu0 0.0
    %675 = vmatpush1.msra.mxu0 0.0
    %676 = vmatprep.subr.mxu0 0.0
    %677 = vmatpush1.msra.mxu0 0.0
    %678 = vmatprep.subr.mxu0 0.0
    %679 = vmatpush1.msra.mxu0 0.0
    %680 = vmatprep.subr.mxu0 0.0
    %681 = vmatpush1.msra.mxu0 0.0
    %682 = vmatprep.subr.mxu0 0.0
    %683 = vmatpush1.msra.mxu0 0.0
    %684 = vmatprep.subr.mxu0 0.0
    %685 = vmatpush1.msra.mxu0 0.0
    %686 = vmatprep.subr.mxu0 0.0
    %687 = vmatpush1.msra.mxu0 0.0
    %688 = vmatprep.subr.mxu0 0.0
    %689 = vmatpush1.msra.mxu0 0.0
    %690 = vmatprep.subr.mxu0 0.0
    %691 = vmatpush1.msra.mxu0 0.0
    %692 = vmatprep.subr.mxu0 0.0
    %693 = vmatpush1.msra.mxu0 0.0
    %694 = vmatprep.subr.mxu0 0.0
    %695 = vmatpush1.msra.mxu0 0.0
    %696 = vmatprep.subr.mxu0 0.0
    %697 = vmatpush1.msra.mxu0 0.0
    %698 = vmatprep.subr.mxu0 0.0
    %699 = vmatpush1.msra.mxu0 0.0
    %700 = vmatprep.subr.mxu0 0.0
    %701 = vmatpush1.msra.mxu0 0.0
    %702 = vmatprep.subr.mxu0 0.0
    %703 = vmatpush1.msra.mxu0 0.0
    %704 = vmatprep.subr.mxu0 0.0
    %705 = vmatpush1.msra.mxu0 0.0
    %706 = vmatprep.subr.mxu0 0.0
    %707 = vmatpush1.msra.mxu0 0.0
    %708 = vmatprep.subr.mxu0 0.0
    %709 = vmatpush1.msra.mxu0 0.0
    %710 = vmatprep.subr.mxu0 0.0
    %711 = vmatpush1.msra.mxu0 0.0
    %712 = vmatprep.mubr.f32.mxu0 0.0
    %713 = vmatmul.mubr.f32.gmra.mrb[0].mxu0 %v113
    %v714 = vpop.f32.mrb[0].mxu0
    %v715 = vadd.f32 0.0, %v714
    %v716 = vpop.f32.mrb[0].mxu0
    %717 = vdwg.mxu0
    %718 = vmatprep.subr.mxu0 0.0
    %719 = vmatpush1.msra.mxu0 %v564
    %720 = vmatprep.subr.mxu0 0.0
    %721 = vmatpush1.msra.mxu0 %v565
    %722 = vmatprep.subr.mxu0 0.0
    %723 = vmatpush1.msra.mxu0 %v566
    %724 = vmatprep.subr.mxu0 0.0
    %725 = vmatpush1.msra.mxu0 %v567
    %726 = vmatprep.subr.mxu0 0.0
    %727 = vmatpush1.msra.mxu0 %v568
    %728 = vmatprep.subr.mxu0 0.0
    %729 = vmatpush1.msra.mxu0 %v569
    %730 = vmatprep.subr.mxu0 0.0
    %731 = vmatpush1.msra.mxu0 %v570
    %732 = vmatprep.subr.mxu0 0.0
    %733 = vmatpush1.msra.mxu0 %v571
    %734 = vmatprep.subr.mxu0 0.0
    %735 = vmatpush1.msra.mxu0 %v572
    %736 = vmatprep.subr.mxu0 0.0
    %737 = vmatpush1.msra.mxu0 %v573
    %738 = vmatprep.subr.mxu0 0.0
    %739 = vmatpush1.msra.mxu0 %v574
    %740 = vmatprep.subr.mxu0 0.0
    %741 = vmatpush1.msra.mxu0 %v575
    %742 = vmatprep.subr.mxu0 0.0
    %743 = vmatpush1.msra.mxu0 %v576
    %744 = vmatprep.subr.mxu0 0.0
    %745 = vmatpush1.msra.mxu0 %v577
    %746 = vmatprep.subr.mxu0 0.0
    %747 = vmatpush1.msra.mxu0 %v578
    %748 = vmatprep.subr.mxu0 0.0
    %749 = vmatpush1.msra.mxu0 %v579
    %750 = vmatprep.subr.mxu0 0.0
    %751 = vmatpush1.msra.mxu0 %v580
    %752 = vmatprep.subr.mxu0 0.0
    %753 = vmatpush1.msra.mxu0 %v581
    %754 = vmatprep.subr.mxu0 0.0
    %755 = vmatpush1.msra.mxu0 %v582
    %756 = vmatprep.subr.mxu0 0.0
    %757 = vmatpush1.msra.mxu0 %v583
    %758 = vmatprep.subr.mxu0 0.0
    %759 = vmatpush1.msra.mxu0 %v584
    %760 = vmatprep.subr.mxu0 0.0
    %761 = vmatpush1.msra.mxu0 %v585
    %762 = vmatprep.subr.mxu0 0.0
    %763 = vmatpush1.msra.mxu0 %v586
    %764 = vmatprep.subr.mxu0 0.0
    %765 = vmatpush1.msra.mxu0 %v587
    %766 = vmatprep.subr.mxu0 0.0
    %767 = vmatpush1.msra.mxu0 %v588
    %768 = vmatprep.subr.mxu0 0.0
    %769 = vmatpush1.msra.mxu0 %v589
    %770 = vmatprep.subr.mxu0 0.0
    %771 = vmatpush1.msra.mxu0 %v590
    %772 = vmatprep.subr.mxu0 0.0
    %773 = vmatpush1.msra.mxu0 %v591
    %774 = vmatprep.subr.mxu0 0.0
    %775 = vmatpush1.msra.mxu0 %v592
    %776 = vmatprep.subr.mxu0 0.0
    %777 = vmatpush1.msra.mxu0 %v593
    %778 = vmatprep.subr.mxu0 0.0
    %779 = vmatpush1.msra.mxu0 %v594
    %780 = vmatprep.subr.mxu0 0.0
    %781 = vmatpush1.msra.mxu0 %v595
    %782 = vmatprep.mubr.f32.mxu0 %v560
    %783 = vmatmul.mubr.f32.gmra.mrb[0].mxu0 %v559
    %v784 = vpop.f32.mrb[0].mxu0
    %v785 = vadd.f32 %v715, %v784
    %v786 = vpop.f32.mrb[0].mxu0
    %787 = vdwg.mxu0
    %788 = vmatprep.subr.mxu0 0.0
    %789 = vmatpush1.msra.mxu0 %v596
    %790 = vmatprep.subr.mxu0 0.0
    %791 = vmatpush1.msra.mxu0 %v597
    %792 = vmatprep.subr.mxu0 0.0
    %793 = vmatpush1.msra.mxu0 %v598
    %794 = vmatprep.subr.mxu0 0.0
    %795 = vmatpush1.msra.mxu0 %v599
    %796 = vmatprep.subr.mxu0 0.0
    %797 = vmatpush1.msra.mxu0 %v600
    %798 = vmatprep.subr.mxu0 0.0
    %799 = vmatpush1.msra.mxu0 %v601
    %800 = vmatprep.subr.mxu0 0.0
    %801 = vmatpush1.msra.mxu0 %v602
    %802 = vmatprep.subr.mxu0 0.0
    %803 = vmatpush1.msra.mxu0 %v603
    %804 = vmatprep.subr.mxu0 0.0
    %805 = vmatpush1.msra.mxu0 %v604
    %806 = vmatprep.subr.mxu0 0.0
    %807 = vmatpush1.msra.mxu0 %v605
    %808 = vmatprep.subr.mxu0 0.0
    %809 = vmatpush1.msra.mxu0 %v606
    %810 = vmatprep.subr.mxu0 0.0
    %811 = vmatpush1.msra.mxu0 %v607
    %812 = vmatprep.subr.mxu0 0.0
    %813 = vmatpush1.msra.mxu0 %v608
    %814 = vmatprep.subr.mxu0 0.0
    %815 = vmatpush1.msra.mxu0 %v609
    %816 = vmatprep.subr.mxu0 0.0
    %817 = vmatpush1.msra.mxu0 %v610
    %818 = vmatprep.subr.mxu0 0.0
    %819 = vmatpush1.msra.mxu0 %v611
    %820 = vmatprep.subr.mxu0 0.0
    %821 = vmatpush1.msra.mxu0 %v612
    %822 = vmatprep.subr.mxu0 0.0
    %823 = vmatpush1.msra.mxu0 %v613
    %824 = vmatprep.subr.mxu0 0.0
    %825 = vmatpush1.msra.mxu0 %v614
    %826 = vmatprep.subr.mxu0 0.0
    %827 = vmatpush1.msra.mxu0 %v615
    %828 = vmatprep.subr.mxu0 0.0
    %829 = vmatpush1.msra.mxu0 %v616
    %830 = vmatprep.subr.mxu0 0.0
    %831 = vmatpush1.msra.mxu0 %v617
    %832 = vmatprep.subr.mxu0 0.0
    %833 = vmatpush1.msra.mxu0 %v618
    %834 = vmatprep.subr.mxu0 0.0
    %835 = vmatpush1.msra.mxu0 %v619
    %836 = vmatprep.subr.mxu0 0.0
    %837 = vmatpush1.msra.mxu0 %v620
    %838 = vmatprep.subr.mxu0 0.0
    %839 = vmatpush1.msra.mxu0 %v621
    %840 = vmatprep.subr.mxu0 0.0
    %841 = vmatpush1.msra.mxu0 %v622
    %842 = vmatprep.subr.mxu0 0.0
    %843 = vmatpush1.msra.mxu0 %v623
    %844 = vmatprep.subr.mxu0 0.0
    %845 = vmatpush1.msra.mxu0 %v624
    %846 = vmatprep.subr.mxu0 0.0
    %847 = vmatpush1.msra.mxu0 %v625
    %848 = vmatprep.subr.mxu0 0.0
    %849 = vmatpush1.msra.mxu0 %v626
    %850 = vmatprep.subr.mxu0 0.0
    %851 = vmatpush1.msra.mxu0 %v627
    %852 = vmatprep.mubr.f32.mxu0 %v562
    %853 = vmatmul.mubr.f32.gmra.mrb[0].mxu0 %v561
    %v854 = vpop.f32.mrb[0].mxu0
    %v855 = vadd.f32 %v785, %v854
    %v856 = vpop.f32.mrb[0].mxu0
    %857 = vdwg.mxu0
    %858 = vmatprep.subr.mxu0 0.0
    %859 = vmatpush1.msra.mxu0 %v628
    %860 = vmatprep.subr.mxu0 0.0
    %861 = vmatpush1.msra.mxu0 %v629
    %862 = vmatprep.subr.mxu0 0.0
    %863 = vmatpush1.msra.mxu0 %v630
    %864 = vmatprep.subr.mxu0 0.0
    %865 = vmatpush1.msra.mxu0 %v631
    %866 = vmatprep.subr.mxu0 0.0
    %867 = vmatpush1.msra.mxu0 %v632
    %868 = vmatprep.subr.mxu0 0.0
    %869 = vmatpush1.msra.mxu0 %v633
    %870 = vmatprep.subr.mxu0 0.0
    %871 = vmatpush1.msra.mxu0 %v634
    %872 = vmatprep.subr.mxu0 0.0
    %873 = vmatpush1.msra.mxu0 %v635
    %874 = vmatprep.subr.mxu0 0.0
    %875 = vmatpush1.msra.mxu0 %v636
    %876 = vmatprep.subr.mxu0 0.0
    %877 = vmatpush1.msra.mxu0 %v637
    %878 = vmatprep.subr.mxu0 0.0
    %879 = vmatpush1.msra.mxu0 %v638
    %880 = vmatprep.subr.mxu0 0.0
    %881 = vmatpush1.msra.mxu0 %v639
    %882 = vmatprep.subr.mxu0 0.0
    %883 = vmatpush1.msra.mxu0 %v640
    %884 = vmatprep.subr.mxu0 0.0
    %885 = vmatpush1.msra.mxu0 %v641
    %886 = vmatprep.subr.mxu0 0.0
    %887 = vmatpush1.msra.mxu0 %v642
    %888 = vmatprep.subr.mxu0 0.0
    %889 = vmatpush1.msra.mxu0 %v643
    %890 = vmatprep.subr.mxu0 0.0
    %891 = vmatpush1.msra.mxu0 0.0
    %892 = vmatprep.subr.mxu0 0.0
    %893 = vmatpush1.msra.mxu0 0.0
    %894 = vmatprep.subr.mxu0 0.0
    %895 = vmatpush1.msra.mxu0 0.0
    %896 = vmatprep.subr.mxu0 0.0
    %897 = vmatpush1.msra.mxu0 0.0
    %898 = vmatprep.subr.mxu0 0.0
    %899 = vmatpush1.msra.mxu0 0.0
    %900 = vmatprep.subr.mxu0 0.0
    %901 = vmatpush1.msra.mxu0 0.0
    %902 = vmatprep.subr.mxu0 0.0
    %903 = vmatpush1.msra.mxu0 0.0
    %904 = vmatprep.subr.mxu0 0.0
    %905 = vmatpush1.msra.mxu0 0.0
    %906 = vmatprep.subr.mxu0 0.0
    %907 = vmatpush1.msra.mxu0 0.0
    %908 = vmatprep.subr.mxu0 0.0
    %909 = vmatpush1.msra.mxu0 0.0
    %910 = vmatprep.subr.mxu0 0.0
    %911 = vmatpush1.msra.mxu0 0.0
    %912 = vmatprep.subr.mxu0 0.0
    %913 = vmatpush1.msra.mxu0 0.0
    %914 = vmatprep.subr.mxu0 0.0
    %915 = vmatpush1.msra.mxu0 0.0
    %916 = vmatprep.subr.mxu0 0.0
    %917 = vmatpush1.msra.mxu0 0.0
    %918 = vmatprep.subr.mxu0 0.0
    %919 = vmatpush1.msra.mxu0 0.0
    %920 = vmatprep.subr.mxu0 0.0
    %921 = vmatpush1.msra.mxu0 0.0
    %922 = vmatprep.mubr.f32.mxu0 0.0
    %923 = vmatmul.mubr.f32.gmra.mrb[0].mxu0 %v563
    %v924 = vpop.f32.mrb[0].mxu0
    %v925 = vadd.f32 %v855, %v924
    %v926 = vpop.f32.mrb[0].mxu0
    %927 = vdwg.mxu0
    %v928 = vld [vmem:[%s5] sm:$0x1]
    %v930 = vlaneseq
    %v931 = vshrl.u32 %v930, 7
    %v932 = vsub.s32 0, %v931
    %v933 = vrot.slane %v928, %v932
    %v935 = vadd.f32 %v925, %v933
    %936 = vst [vmem:[#allocation11] sm:$0xff] %v935
    // Predicated region
    $region46: #{basis_linear_pallas.1} parent=1 // pred_check
      _
    $region47: #{basis_linear_pallas.1} parent=1 // pred_check_branch
      %938 = sbr.rel (0) target = $region49
    $region48: #{basis_linear_pallas.1} parent=1 // pred_region
      %s940 = ssub.s32 128, 128
      %941 = vsyncadd [#allocation4], %s940
      %s943 = sshll.u32 [#allocation11], 4
      %s944 = int_to_ptr.vmem [resolvable:$true] %s943
      %946 = dma.vmem_to_hbm [thread:$0]  %s944, 128, %s6, [#allocation4]
    $region49: #{basis_linear_pallas.1} parent=1 // pred_fallthru
      _
    // Predicated region
    $region50: #{basis_linear_pallas.1} parent=1 // pred_check
      _
    $region51: #{basis_linear_pallas.1} parent=1 // pred_check_branch
      %948 = sbr.rel (0) target = $region53
    $region52: #{basis_linear_pallas.1} parent=1 // pred_region
      %949 = dma.done [#allocation4], 128
    $region53: #{basis_linear_pallas.1} parent=1 // pred_fallthru
      _
    %950 = vsyncpa [#allocation3], 1
    %951 = vsyncpa [#allocation6], 1
    %952 = vsyncpa [#allocation9], 1
    %953 = vsyncpa [#allocation4], 1

</llo_original>
